<compile_context>
chip_gen: v5e
topology: v5e:2x2
jax: 0.10.0
libtpu: 0.0.40
codegen_flags: <defaults>
</compile_context>

<pallas_src>
import functools

import jax
import jax.numpy as jnp
from jax import lax
from jax.experimental import pallas as pl
from jax.experimental.pallas import tpu as pltpu

_EPS = 1e-12  # F.normalize default eps


# --------------------------------------------------------------------------- #
# In-kernel helpers
# --------------------------------------------------------------------------- #
def _head_mask(heads, dim_head, scale):
    """(hidden, hidden) mask: `scale` on the per-head diagonal blocks, else 0."""
    hidden = heads * dim_head
    row_h = lax.broadcasted_iota(jnp.int32, (hidden, hidden), 0) // dim_head
    col_h = lax.broadcasted_iota(jnp.int32, (hidden, hidden), 1) // dim_head
    return jnp.where(row_h == col_h, jnp.float32(scale), jnp.float32(0.0))


def _attend_columns(q, k, v, head_mask, w_out, b_out, gain, *,
                    heads, dim_head, compute_dtype, approx_recip):
    """Attention + to_out + RMSNorm for one batch element.

    q, k, v: (hidden, n) float32, rows indexed by h*dim_head + channel.
    Returns y: (C, n) float32 (bias added, RMS-normalized, gained).
    """
    hidden, n = q.shape
    # q: softmax over the per-head channel axis (torch dim=-2), per column (f32).
    q3 = q.reshape(heads, dim_head, n)
    q3 = jnp.exp(q3 - jnp.max(q3, axis=1, keepdims=True))
    q3 = q3 * pl.reciprocal(jnp.sum(q3, axis=1, keepdims=True), approx=approx_recip)
    q = q3.reshape(hidden, n).astype(compute_dtype)
    # k: softmax over the sequence axis (torch dim=-1), per row (f32).
    k = jnp.exp(k - jnp.max(k, axis=1, keepdims=True))
    k = k * pl.reciprocal(jnp.sum(k, axis=1, keepdims=True), approx=approx_recip)
    # ctx[d, e] = sum_n k[d, n] v[e, n]; keep per-head diagonal blocks only
    # (attention scale is folded into the mask).
    ctx = lax.dot_general(k.astype(compute_dtype), v.astype(compute_dtype),
                          (((1,), (1,)), ((), ())),
                          preferred_element_type=jnp.float32)
    ctx = (ctx * head_mask).astype(compute_dtype)
    # out[e, n] = sum_d ctx[d, e] q[d, n]
    out = lax.dot_general(ctx, q, (((0,), (0,)), ((), ())),
                          preferred_element_type=jnp.float32)
    # to_out pointwise conv (+bias) then RMSNorm over channels, fused per element.
    y = jnp.dot(w_out, out.astype(compute_dtype), preferred_element_type=jnp.float32)
    y = y + b_out
    ss = jnp.sum(y * y, axis=0, keepdims=True)
    y = y * lax.rsqrt(jnp.maximum(ss, jnp.float32(_EPS * _EPS)))
    return y * gain


# --------------------------------------------------------------------------- #
# Kernels
# --------------------------------------------------------------------------- #
def _self_attn_n1_kernel(x_ref, wv_ref, wout_ref, bout_ref, g_ref, o_ref, *,
                         scale, compute_dtype):
    """N == 1 (SelfLinearAttn1d): attention output == scale * v exactly."""
    c = x_ref.shape[0]
    x = x_ref[...].astype(compute_dtype)
    v = jnp.dot(wv_ref[...], x, preferred_element_type=jnp.float32)     # (hidden, Bblk)
    v = (v * jnp.float32(scale)).astype(compute_dtype)
    y = jnp.dot(wout_ref[...], v, preferred_element_type=jnp.float32)   # (C, Bblk)
    y = y + bout_ref[...].astype(jnp.float32)
    ss = jnp.sum(y * y, axis=0, keepdims=True)
    y = y * lax.rsqrt(jnp.maximum(ss, jnp.float32(_EPS * _EPS)))
    y = y * (g_ref[...].astype(jnp.float32) * jnp.float32(c ** 0.5))
    o_ref[...] = y.astype(o_ref.dtype)


def _linear_attn_folded_kernel(x_ref, wqkv_ref, wout_ref, bout_ref, g_ref,
                               o_ref, qkv_ref, *, heads, dim_head, bblk, n,
                               scale, compute_dtype, approx_recip):
    """Batch-folded path (n % 128 == 0). x_ref/o_ref: (C, bblk*n) lane-dense slabs."""
    hidden = heads * dim_head
    c = x_ref.shape[0]
    # to_qkv pointwise conv: one lane-dense matmul over all folded columns,
    # staged through VMEM scratch so per-batch slices are cheap aligned ref reads.
    qkv_ref[...] = jnp.dot(wqkv_ref[...], x_ref[...].astype(compute_dtype),
                           preferred_element_type=jnp.float32)

    head_mask = _head_mask(heads, dim_head, scale)            # hoisted out of the loop
    w_out = wout_ref[...]
    b_out = bout_ref[...].astype(jnp.float32)
    gain = g_ref[...].astype(jnp.float32) * jnp.float32(c ** 0.5)

    def process(bi):
        start = bi * n
        if not isinstance(bi, int):
            start = pl.multiple_of(start, 128)                # lane-tile aligned
        cols = pl.ds(start, n)
        y = _attend_columns(qkv_ref[0:hidden, cols],
                            qkv_ref[hidden:2 * hidden, cols],
                            qkv_ref[2 * hidden:3 * hidden, cols],
                            head_mask, w_out, b_out, gain,
                            heads=heads, dim_head=dim_head,
                            compute_dtype=compute_dtype,
                            approx_recip=approx_recip)
        o_ref[:, cols] = y.astype(o_ref.dtype)                # fused store, no concat

    if bblk == 1:
        process(0)
    else:
        # fori_loop bounds live ranges (no unbounded static unroll + concat slab).
        def body(bi, carry):
            process(bi)
            return carry
        lax.fori_loop(0, bblk, body, 0, unroll=(bblk <= 8))


def _linear_attn_per_batch_kernel(x_ref, wqkv_ref, wout_ref, bout_ref, g_ref,
                                  o_ref, *, heads, dim_head, scale,
                                  compute_dtype, approx_recip):
    """Fallback for n % 128 != 0: one batch element per grid step, (1,C,N) blocks."""
    hidden = heads * dim_head
    c = x_ref.shape[1]
    x = x_ref[0].astype(compute_dtype)
    qkv = jnp.dot(wqkv_ref[...], x, preferred_element_type=jnp.float32)
    y = _attend_columns(qkv[0 * hidden:1 * hidden],
                        qkv[1 * hidden:2 * hidden],
                        qkv[2 * hidden:3 * hidden],
                        _head_mask(heads, dim_head, scale),
                        wout_ref[...],
                        bout_ref[...].astype(jnp.float32),
                        g_ref[...].astype(jnp.float32) * jnp.float32(c ** 0.5),
                        heads=heads, dim_head=dim_head,
                        compute_dtype=compute_dtype, approx_recip=approx_recip)
    o_ref[0] = y.astype(o_ref.dtype)


# --------------------------------------------------------------------------- #
# Wrapper-side tiling helpers
# --------------------------------------------------------------------------- #
def _tpu_vmem_limit_and_budget():
    """Returns (vmem_limit_bytes or None, per-grid-step tile budget in bytes)."""
    try:
        cap = int(pltpu.get_tpu_info().vmem_capacity_bytes)
    except Exception:
        # Unknown hardware: conservative budget that fits v5e's 16 MiB default scope.
        return None, 12 * 1024 * 1024
    limit = min(int(cap * 0.8), 100 * 1024 * 1024)   # ~51 MiB on v7x, ~100 MiB on v5e/v6e
    return limit, limit // 2                          # headroom for compiler temporaries


def _folded_step_bytes(c, hidden, n, bblk, csz, osz):
    """Rough per-grid-step VMEM footprint of the batch-folded kernel."""
    bn = bblk * n
    c_pad = max(c, 128)                               # weight lane padding
    io = 2 * c * bn * (csz + osz)                     # double-buffered x / o blocks
    qkv = 3 * hidden * bn * 4                         # f32 qkv scratch
    per_b = (4 * hidden * n + 2 * hidden * hidden + 2 * c * n) * 4
    weights = 2 * (4 * hidden * c_pad * csz + 2 * c * 4)
    return io + qkv + per_b + weights


def _pick_batch_block(b, n, c, hidden, csz, osz, budget):
    """Largest divisor of b fitting VMEM; prefer >= 2 grid steps (megacore / DMA overlap)."""
    divisors = [d for d in range(1, b + 1) if b % d == 0]
    valid = [d for d in divisors if d == b or (d * n) % 128 == 0]
    fitting = [d for d in valid
               if _folded_step_bytes(c, hidden, n, d, csz, osz) <= budget]
    multi = [d for d in fitting if b // d >= 2]
    if multi:
        return max(multi)
    if fitting:
        return max(fitting)
    return min(valid)


def _pick_n1_block(b, c, hidden, csz, osz, budget):
    divisors = [d for d in range(1, b + 1) if b % d == 0]
    valid = [d for d in divisors if d == b or d % 128 == 0]

    def step_bytes(d):
        return (2 * c * d * (csz + osz) + 2 * hidden * d * 4
                + 2 * (2 * hidden * max(c, 128) * csz + 2 * c * 4))

    fitting = [d for d in valid if step_bytes(d) <= budget]
    multi = [d for d in fitting if b // d >= 2]
    if multi:
        return max(multi)
    if fitting:
        return max(fitting)
    return min(valid)


# --------------------------------------------------------------------------- #
# Public entry points
# --------------------------------------------------------------------------- #
def linear_attention_1d(x, w_qkv, w_out, b_out, g, *, heads, dim_head,
                        batch_block=None, compute_dtype=jnp.bfloat16,
                        approx_recip=True):
    """LinearAttention1d forward. x: (B, C, N) channels-first."""
    b, c, n = x.shape
    hidden = heads * dim_head
    assert w_qkv.shape == (3 * hidden, c)
    assert w_out.shape == (c, hidden)
    scale = dim_head ** -0.5
    out_dtype = x.dtype
    csz = jnp.dtype(compute_dtype).itemsize
    osz = jnp.dtype(out_dtype).itemsize

    vmem_limit, budget = _tpu_vmem_limit_and_budget()

    # Pre-cast MXU operands once in the wrapper (halves weight DMA, removes
    # per-step VPU casts). Bias / gain / softmax / RMSNorm math stay f32.
    wq = w_qkv.astype(compute_dtype)
    wo = w_out.astype(compute_dtype)
    b_out2 = b_out.reshape(c, 1).astype(jnp.float32)
    g2 = g.reshape(c, 1).astype(jnp.float32)

    if n == 1:
        # ---- SelfLinearAttn1d case: attention collapses to out = scale * v ----
        wv = wq[2 * hidden:]                                      # only the v rows
        x_flat = jnp.transpose(x[:, :, 0]).astype(compute_dtype)  # (C, B)
        blk = batch_block if batch_block is not None else \
            _pick_n1_block(b, c, hidden, csz, osz, budget)
        assert b % blk == 0 and (blk == b or blk % 128 == 0), (b, blk)
        grid = (b // blk,)
        kernel = functools.partial(_self_attn_n1_kernel, scale=scale,
                                   compute_dtype=compute_dtype)
        out_flat = pl.pallas_call(
            kernel,
            out_shape=jax.ShapeDtypeStruct((c, b), out_dtype),
            grid=grid,
            in_specs=[
                pl.BlockSpec((c, blk), lambda i: (0, i)),
                pl.BlockSpec((hidden, c), lambda i: (0, 0)),
                pl.BlockSpec((c, hidden), lambda i: (0, 0)),
                pl.BlockSpec((c, 1), lambda i: (0, 0)),
                pl.BlockSpec((c, 1), lambda i: (0, 0)),
            ],
            out_specs=pl.BlockSpec((c, blk), lambda i: (0, i)),
            compiler_params=pltpu.CompilerParams(
                dimension_semantics=("parallel",),
                vmem_limit_bytes=vmem_limit),
            cost_estimate=pl.CostEstimate(
                flops=int(4 * hidden * c * b),
                transcendentals=int(b),
                bytes_accessed=int((csz + osz) * c * b + csz * 2 * hidden * c + 8 * c)),
        )(x_flat, wv, wo, b_out2, g2)
        return jnp.transpose(out_flat).reshape(b, c, 1)

    flops = 2 * b * n * (3 * hidden * c + 2 * hidden * hidden + hidden * c)
    transcend = 2 * hidden * b * n
    bytes_acc = (csz + osz) * c * b * n + csz * 4 * hidden * c + 8 * c  # weights once

    if n % 128 == 0:
        # ---- Batch-folded lane-dense path ----
        x_flat = jnp.transpose(x, (1, 0, 2)).reshape(c, b * n).astype(compute_dtype)
        blk = batch_block if batch_block is not None else \
            _pick_batch_block(b, n, c, hidden, csz, osz, budget)
        assert b % blk == 0 and (blk == b or (blk * n) % 128 == 0), (b, n, blk)
        bn = blk * n
        grid = (b // blk,)
        kernel = functools.partial(
            _linear_attn_folded_kernel, heads=heads, dim_head=dim_head,
            bblk=blk, n=n, scale=scale, compute_dtype=compute_dtype,
            approx_recip=approx_recip)
        out_flat = pl.pallas_call(
            kernel,
            out_shape=jax.ShapeDtypeStruct((c, b * n), out_dtype),
            grid=grid,
            in_specs=[
                pl.BlockSpec((c, bn), lambda i: (0, i)),
                pl.BlockSpec((3 * hidden, c), lambda i: (0, 0)),
                pl.BlockSpec((c, hidden), lambda i: (0, 0)),
                pl.BlockSpec((c, 1), lambda i: (0, 0)),
                pl.BlockSpec((c, 1), lambda i: (0, 0)),
            ],
            out_specs=pl.BlockSpec((c, bn), lambda i: (0, i)),
            scratch_shapes=[pltpu.VMEM((3 * hidden, bn), jnp.float32)],
            compiler_params=pltpu.CompilerParams(
                dimension_semantics=("parallel",),
                vmem_limit_bytes=vmem_limit),
            cost_estimate=pl.CostEstimate(
                flops=int(flops), transcendentals=int(transcend),
                bytes_accessed=int(bytes_acc)),
        )(x_flat, wq, wo, b_out2, g2)
        return out_flat.reshape(c, b, n).transpose(1, 0, 2)

    # ---- Fallback path (n not a multiple of 128) ----
    kernel = functools.partial(
        _linear_attn_per_batch_kernel, heads=heads, dim_head=dim_head,
        scale=scale, compute_dtype=compute_dtype, approx_recip=approx_recip)
    return pl.pallas_call(
        kernel,
        out_shape=jax.ShapeDtypeStruct((b, c, n), out_dtype),
        grid=(b,),
        in_specs=[
            pl.BlockSpec((1, c, n), lambda i: (i, 0, 0)),
            pl.BlockSpec((3 * hidden, c), lambda i: (0, 0)),
            pl.BlockSpec((c, hidden), lambda i: (0, 0)),
            pl.BlockSpec((c, 1), lambda i: (0, 0)),
            pl.BlockSpec((c, 1), lambda i: (0, 0)),
        ],
        out_specs=pl.BlockSpec((1, c, n), lambda i: (i, 0, 0)),
        compiler_params=pltpu.CompilerParams(
            dimension_semantics=("parallel",),
            vmem_limit_bytes=vmem_limit),
        cost_estimate=pl.CostEstimate(
            flops=int(flops), transcendentals=int(transcend),
            bytes_accessed=int(bytes_acc)),
    )(x.astype(compute_dtype), wq, wo, b_out2, g2)


def self_linear_attn_1d(x, w_qkv, w_out, b_out, g, *, num_heads=8, dim_heads=32,
                        compute_dtype=jnp.bfloat16):
    """SelfLinearAttn1d.forward: unsqueeze(-1) -> LinearAttention1d -> squeeze(-1)."""
    y = linear_attention_1d(x[:, :, None], w_qkv, w_out, b_out, g,
                            heads=num_heads, dim_head=dim_heads,
                            compute_dtype=compute_dtype)
    return y[:, :, 0]


# --------------------------------------------------------------------------- #
# Plain-JAX reference (mirrors the PyTorch module)
# --------------------------------------------------------------------------- #
def reference_forward(x, w_qkv, w_out, b_out, g, *, heads, dim_head):
    b, c, n = x.shape
    hidden = heads * dim_head
    scale = dim_head ** -0.5
    qkv = jnp.einsum('oc,bcn->bon', w_qkv, x)
    q, k, v = jnp.split(qkv, 3, axis=1)
    rearr = lambda t: t.reshape(b, heads, dim_head, n)
    q, k, v = rearr(q), rearr(k), rearr(v)
    q = jax.nn.softmax(q, axis=-2) * scale
    k = jax.nn.softmax(k, axis=-1)
    ctx = jnp.einsum('bhdn,bhen->bhde', k, v)
    out = jnp.einsum('bhde,bhdn->bhen', ctx, q)
    out = out.reshape(b, hidden, n)
    y = jnp.einsum('oc,bcn->bon', w_out, out) + b_out.reshape(1, c, 1)
    norm = jnp.sqrt(jnp.sum(y * y, axis=1, keepdims=True))
    y = y / jnp.maximum(norm, 1e-12)
    return y * g.reshape(1, c, 1) * (c ** 0.5)


if __name__ == "__main__":
    key = jax.random.PRNGKey(0)

    # ---- Test 1: SelfLinearAttn1d (N == 1 after unsqueeze) -------------------
    B, C, HEADS, DH = 4, 8, 8, 32
    HID = HEADS * DH
    k1, k2, k3, k4, k5 = jax.random.split(key, 5)
    x2d = jax.random.normal(k1, (B, C), dtype=jnp.float32)
    w_qkv = jax.random.normal(k2, (3 * HID, C), dtype=jnp.float32) * 0.1
    w_out = jax.random.normal(k3, (C, HID), dtype=jnp.float32) * 0.1
    b_out = jax.random.normal(k4, (C,), dtype=jnp.float32) * 0.1
    g = jnp.ones((C,), dtype=jnp.float32)

    ref1 = reference_forward(x2d[:, :, None], w_qkv, w_out, b_out, g,
                             heads=HEADS, dim_head=DH)[:, :, 0]

    out1 = self_linear_attn_1d(x2d, w_qkv, w_out, b_out, g,
                               num_heads=HEADS, dim_heads=DH)   # bf16 default
    out1 = jax.block_until_ready(out1)
    assert out1.shape == (B, C)
    assert jnp.allclose(out1, ref1, atol=1e-1, rtol=1e-1), (
        f"n=1 bf16 max abs diff = {jnp.max(jnp.abs(out1 - ref1))}")

    out1f = self_linear_attn_1d(x2d, w_qkv, w_out, b_out, g, num_heads=HEADS,
                                dim_heads=DH, compute_dtype=jnp.float32)
    out1f = jax.block_until_ready(out1f)
    assert jnp.allclose(out1f, ref1, atol=1e-2, rtol=1e-2), (
        f"n=1 f32 max abs diff = {jnp.max(jnp.abs(out1f - ref1))}")

    # ---- Test 2: general path, N = 128 (batch-folded lane-dense kernel) -----
    B2, C2, N2, HEADS2, DH2 = 4, 8, 128, 4, 32
    HID2 = HEADS2 * DH2
    j1, j2, j3, j4 = jax.random.split(k5, 4)
    x3 = jax.random.normal(j1, (B2, C2, N2), dtype=jnp.float32)
    wq2 = jax.random.normal(j2, (3 * HID2, C2), dtype=jnp.float32) * 0.1
    wo2 = jax.random.normal(j3, (C2, HID2), dtype=jnp.float32) * 0.1
    bo2 = jax.random.normal(j4, (C2,), dtype=jnp.float32) * 0.1
    gg2 = jnp.ones((C2,), dtype=jnp.float32)

    ref2 = reference_forward(x3, wq2, wo2, bo2, gg2, heads=HEADS2, dim_head=DH2)

    out2 = linear_attention_1d(x3, wq2, wo2, bo2, gg2, heads=HEADS2, dim_head=DH2,
                               compute_dtype=jnp.float32)
    out2 = jax.block_until_ready(out2)
    assert out2.shape == (B2, C2, N2)
    assert jnp.allclose(out2, ref2, atol=1e-2, rtol=1e-2), (
        f"folded f32 max abs diff = {jnp.max(jnp.abs(out2 - ref2))}")

    out2b = linear_attention_1d(x3, wq2, wo2, bo2, gg2, heads=HEADS2, dim_head=DH2)
    out2b = jax.block_until_ready(out2b)
    assert jnp.allclose(out2b, ref2, atol=1e-1, rtol=1e-1), (
        f"folded bf16 max abs diff = {jnp.max(jnp.abs(out2b - ref2))}")

    # ---- Test 3: fallback path, N % 128 != 0 ---------------------------------
    B3, N3 = 2, 16
    x4 = jax.random.normal(j1, (B3, C2, N3), dtype=jnp.float32)
    ref3 = reference_forward(x4, wq2, wo2, bo2, gg2, heads=HEADS2, dim_head=DH2)
    out3 = linear_attention_1d(x4, wq2, wo2, bo2, gg2, heads=HEADS2, dim_head=DH2,
                               compute_dtype=jnp.float32)
    out3 = jax.block_until_ready(out3)
    assert out3.shape == (B3, C2, N3)
    assert jnp.allclose(out3, ref3, atol=1e-2, rtol=1e-2), (
        f"per-batch f32 max abs diff = {jnp.max(jnp.abs(out3 - ref3))}")

    print("KERNEL_OK")
</pallas_src>

<mosaic_0001>
module attributes {stable_mosaic.version = 11 : i64} {
  func.func @_self_attn_n1_kernel(%arg0: i32, %arg1: memref<8x4xbf16, #tpu.memory_space<vmem>>, %arg2: memref<256x8xbf16, #tpu.memory_space<vmem>>, %arg3: memref<8x256xbf16, #tpu.memory_space<vmem>>, %arg4: memref<8x1xf32, #tpu.memory_space<vmem>>, %arg5: memref<8x1xf32, #tpu.memory_space<vmem>>, %arg6: memref<8x4xf32, #tpu.memory_space<vmem>>) attributes {dimension_semantics = [#tpu.dimension_semantics<parallel>], iteration_bounds = array<i64: 1>, scalar_prefetch = 0 : i64, scratch_operands = 0 : i64, tpu.core_type = #tpu.core_type<tc>, window_params = [{transform_indices = @transform_0, window_bounds = array<i64: 8, 4>}, {pipeline_mode = #tpu.pipeline_mode<synchronous>, transform_indices = @transform_1, window_bounds = array<i64: 256, 8>}, {pipeline_mode = #tpu.pipeline_mode<synchronous>, transform_indices = @transform_2, window_bounds = array<i64: 8, 256>}, {pipeline_mode = #tpu.pipeline_mode<synchronous>, transform_indices = @transform_3, window_bounds = array<i64: 8, 1>}, {pipeline_mode = #tpu.pipeline_mode<synchronous>, transform_indices = @transform_4, window_bounds = array<i64: 8, 1>}, {transform_indices = @transform_5, window_bounds = array<i64: 8, 4>}]} {
    %c0 = arith.constant 0 : index
    %c0_0 = arith.constant 0 : index
    %0 = vector.load %arg1[%c0, %c0_0] : memref<8x4xbf16, #tpu.memory_space<vmem>>, vector<8x4xbf16>
    %c0_1 = arith.constant 0 : index
    %c0_2 = arith.constant 0 : index
    %1 = vector.load %arg2[%c0_1, %c0_2] : memref<256x8xbf16, #tpu.memory_space<vmem>>, vector<256x8xbf16>
    %cst = arith.constant dense<0.000000e+00> : vector<256x4xf32>
    %2 = tpu.matmul %1, %0, %cst {dimension_numbers = #tpu.dot_dimension_numbers<[1], [0], [0], [1], [0, 0, 1, 1], [], []>} : vector<256x8xbf16>, vector<8x4xbf16>, vector<256x4xf32> -> vector<256x4xf32>
    %cst_3 = arith.constant 0.176776692 : f32
    %3 = vector.broadcast %cst_3 : f32 to vector<256x4xf32>
    %4 = arith.mulf %2, %3 : vector<256x4xf32>
    %5 = arith.truncf %4 : vector<256x4xf32> to vector<256x4xbf16>
    %c0_4 = arith.constant 0 : index
    %c0_5 = arith.constant 0 : index
    %6 = vector.load %arg3[%c0_4, %c0_5] : memref<8x256xbf16, #tpu.memory_space<vmem>>, vector<8x256xbf16>
    %cst_6 = arith.constant dense<0.000000e+00> : vector<8x4xf32>
    %7 = tpu.matmul %6, %5, %cst_6 {dimension_numbers = #tpu.dot_dimension_numbers<[1], [0], [0], [1], [0, 0, 1, 1], [], []>} : vector<8x256xbf16>, vector<256x4xbf16>, vector<8x4xf32> -> vector<8x4xf32>
    %c0_7 = arith.constant 0 : index
    %c0_8 = arith.constant 0 : index
    %8 = vector.load %arg4[%c0_7, %c0_8] : memref<8x1xf32, #tpu.memory_space<vmem>>, vector<8x1xf32>
    %9 = vector.broadcast %8 : vector<8x1xf32> to vector<8x4xf32>
    %10 = arith.addf %7, %9 : vector<8x4xf32>
    %11 = arith.mulf %10, %10 : vector<8x4xf32>
    %cst_9 = arith.constant dense<0.000000e+00> : vector<4xf32>
    %12 = vector.multi_reduction <add>, %11, %cst_9 [0] : vector<8x4xf32> to vector<4xf32>
    %13 = vector.shape_cast %12 : vector<4xf32> to vector<1x4xf32>
    %cst_10 = arith.constant 1.000000e-24 : f32
    %14 = vector.broadcast %cst_10 : f32 to vector<1x4xf32>
    %15 = arith.maximumf %13, %14 : vector<1x4xf32>
    %16 = math.rsqrt %15 : vector<1x4xf32>
    %17 = vector.broadcast %16 : vector<1x4xf32> to vector<8x4xf32>
    %18 = arith.mulf %10, %17 : vector<8x4xf32>
    %c0_11 = arith.constant 0 : index
    %c0_12 = arith.constant 0 : index
    %19 = vector.load %arg5[%c0_11, %c0_12] : memref<8x1xf32, #tpu.memory_space<vmem>>, vector<8x1xf32>
    %cst_13 = arith.constant 2.82842708 : f32
    %20 = vector.broadcast %cst_13 : f32 to vector<8x1xf32>
    %21 = arith.mulf %19, %20 : vector<8x1xf32>
    %22 = vector.broadcast %21 : vector<8x1xf32> to vector<8x4xf32>
    %23 = arith.mulf %18, %22 : vector<8x4xf32>
    %c0_14 = arith.constant 0 : index
    %c0_15 = arith.constant 0 : index
    %24 = vector.load %arg6[%c0_14, %c0_15] : memref<8x4xf32, #tpu.memory_space<vmem>>, vector<8x4xf32>
    tpu.vector_store %arg6[%c0_14, %c0_15], %23 {strides = array<i32>} : memref<8x4xf32, #tpu.memory_space<vmem>>, vector<8x4xf32>,
    return
  }
  func.func @transform_0(%arg0: i32) -> (i32, i32) {
    %c0_i32 = arith.constant 0 : i32
    %c0_i32_0 = arith.constant 0 : i32
    return %c0_i32, %arg0 : i32, i32
  }
  func.func @transform_1(%arg0: i32) -> (i32, i32) {
    %c0_i32 = arith.constant 0 : i32
    %c0_i32_0 = arith.constant 0 : i32
    %c0_i32_1 = arith.constant 0 : i32
    return %c0_i32, %c0_i32_0 : i32, i32
  }
  func.func @transform_2(%arg0: i32) -> (i32, i32) {
    %c0_i32 = arith.constant 0 : i32
    %c0_i32_0 = arith.constant 0 : i32
    %c0_i32_1 = arith.constant 0 : i32
    return %c0_i32, %c0_i32_0 : i32, i32
  }
  func.func @transform_3(%arg0: i32) -> (i32, i32) {
    %c0_i32 = arith.constant 0 : i32
    %c0_i32_0 = arith.constant 0 : i32
    %c0_i32_1 = arith.constant 0 : i32
    return %c0_i32, %c0_i32_0 : i32, i32
  }
  func.func @transform_4(%arg0: i32) -> (i32, i32) {
    %c0_i32 = arith.constant 0 : i32
    %c0_i32_0 = arith.constant 0 : i32
    %c0_i32_1 = arith.constant 0 : i32
    return %c0_i32, %c0_i32_0 : i32, i32
  }
  func.func @transform_5(%arg0: i32) -> (i32, i32) {
    %c0_i32 = arith.constant 0 : i32
    %c0_i32_0 = arith.constant 0 : i32
    return %c0_i32, %arg0 : i32, i32
  }
}

</mosaic_0001>

<llo_original>
// kernel: tpu_custom_call.1
$region0: #{tpu_custom_call.1}
  #allocation0 [shape = 'u32[]', space=smem, size = 0x4, offset = 0x4, fixed_abs, tag = 'smem constant byte address 0x4 - core index']
  #allocation1 [shape = 'u32[72,128]{1,0:T(1,128)}', space=vmem, size = 0x9000, scoped, tag = 'internal scratch']
  %s0 = inlined_call_operand.vmem [shape: bf16[8,4], index: 0, kind: input, shape index: {}]
  %s1 = inlined_call_operand.vmem [shape: bf16[256,8], index: 1, kind: input, shape index: {}]
  %s2 = inlined_call_operand.vmem [shape: bf16[8,256], index: 2, kind: input, shape index: {}]
  %s3 = inlined_call_operand.vmem [shape: f32[8,1], index: 3, kind: input, shape index: {}]
  %s4 = inlined_call_operand.vmem [shape: f32[8,1], index: 4, kind: input, shape index: {}]
  %s5 = inlined_call_operand.vmem [shape: f32[8,4], index: 5, kind: output, shape index: {}]
  %s6 = sld [smem:[#allocation0]]
  $region30: #{tpu_custom_call.1} parent=0
    _
  %s8 = ssub.s32 1, %s6
  %s9 = scalar_select 0, %s8, %s6
  // Predicated region
  $region2: #{tpu_custom_call.1} parent=0 // pred_check
    _
  $region3: #{tpu_custom_call.1} parent=0 // pred_check_branch
    %11 = sbr.rel (0) target = $region5
  $region4: #{tpu_custom_call.1} parent=0 // pred_region
    _
  $region5: #{tpu_custom_call.1} parent=0 // pred_fallthru
    _
  // Predicated region
  $region6: #{tpu_custom_call.1} parent=0 // pred_check
    _
  $region7: #{tpu_custom_call.1} parent=0 // pred_check_branch
    %13 = sbr.rel (0) target = $region9
  $region8: #{tpu_custom_call.1} parent=0 // pred_region
    _
  $region9: #{tpu_custom_call.1} parent=0 // pred_fallthru
    _
  // Predicated region
  $region10: #{tpu_custom_call.1} parent=0 // pred_check
    _
  $region11: #{tpu_custom_call.1} parent=0 // pred_check_branch
    %15 = sbr.rel (0) target = $region13
  $region12: #{tpu_custom_call.1} parent=0 // pred_region
    _
  $region13: #{tpu_custom_call.1} parent=0 // pred_fallthru
    _
  // Predicated region
  $region14: #{tpu_custom_call.1} parent=0 // pred_check
    _
  $region15: #{tpu_custom_call.1} parent=0 // pred_check_branch
    %17 = sbr.rel (0) target = $region17
  $region16: #{tpu_custom_call.1} parent=0 // pred_region
    _
  $region17: #{tpu_custom_call.1} parent=0 // pred_fallthru
    _
  // Predicated region
  $region18: #{tpu_custom_call.1} parent=0 // pred_check
    _
  $region19: #{tpu_custom_call.1} parent=0 // pred_check_branch
    %19 = sbr.rel (0) target = $region21
  $region20: #{tpu_custom_call.1} parent=0 // pred_region
    _
  $region21: #{tpu_custom_call.1} parent=0 // pred_fallthru
    _
  %v21 = vld [vmem:[%s0] sm:$0xf]
  %v22 = vld [vmem:[%s1] sm:$0xf]
  %v23 = vld [vmem:[%s1 + $0x4] sm:$0xf]
  %v24 = vld [vmem:[%s1 + $0x8] sm:$0xf]
  %v25 = vld [vmem:[%s1 + $0xc] sm:$0xf]
  %v26 = vld [vmem:[%s1 + $0x10] sm:$0xf]
  %v27 = vld [vmem:[%s1 + $0x14] sm:$0xf]
  %v28 = vld [vmem:[%s1 + $0x18] sm:$0xf]
  %v29 = vld [vmem:[%s1 + $0x1c] sm:$0xf]
  %v30 = vld [vmem:[%s1 + $0x20] sm:$0xf]
  %v31 = vld [vmem:[%s1 + $0x24] sm:$0xf]
  %v32 = vld [vmem:[%s1 + $0x28] sm:$0xf]
  %v33 = vld [vmem:[%s1 + $0x2c] sm:$0xf]
  %v34 = vld [vmem:[%s1 + $0x30] sm:$0xf]
  %v35 = vld [vmem:[%s1 + $0x34] sm:$0xf]
  %v36 = vld [vmem:[%s1 + $0x38] sm:$0xf]
  %v37 = vld [vmem:[%s1 + $0x3c] sm:$0xf]
  %v38 = vld [vmem:[%s1 + $0x40] sm:$0xf]
  %v39 = vld [vmem:[%s1 + $0x44] sm:$0xf]
  %v40 = vld [vmem:[%s1 + $0x48] sm:$0xf]
  %v41 = vld [vmem:[%s1 + $0x4c] sm:$0xf]
  %v42 = vld [vmem:[%s1 + $0x50] sm:$0xf]
  %v43 = vld [vmem:[%s1 + $0x54] sm:$0xf]
  %v44 = vld [vmem:[%s1 + $0x58] sm:$0xf]
  %v45 = vld [vmem:[%s1 + $0x5c] sm:$0xf]
  %v46 = vld [vmem:[%s1 + $0x60] sm:$0xf]
  %v47 = vld [vmem:[%s1 + $0x64] sm:$0xf]
  %v48 = vld [vmem:[%s1 + $0x68] sm:$0xf]
  %v49 = vld [vmem:[%s1 + $0x6c] sm:$0xf]
  %v50 = vld [vmem:[%s1 + $0x70] sm:$0xf]
  %v51 = vld [vmem:[%s1 + $0x74] sm:$0xf]
  %v52 = vld [vmem:[%s1 + $0x78] sm:$0xf]
  %v53 = vld [vmem:[%s1 + $0x7c] sm:$0xf]
  %v86 = vunpack.c.l.b16 %v22
  %v87 = vunpack.c.l.b16 %v23
  %v88 = vunpack.c.l.b16 %v24
  %v89 = vunpack.c.l.b16 %v25
  %v90 = vunpack.c.l.b16 %v26
  %v91 = vunpack.c.l.b16 %v27
  %v92 = vunpack.c.l.b16 %v28
  %v93 = vunpack.c.l.b16 %v29
  %v94 = vunpack.c.l.b16 %v30
  %v95 = vunpack.c.l.b16 %v31
  %v96 = vunpack.c.l.b16 %v32
  %v97 = vunpack.c.l.b16 %v33
  %v98 = vunpack.c.l.b16 %v34
  %v99 = vunpack.c.l.b16 %v35
  %v100 = vunpack.c.l.b16 %v36
  %v101 = vunpack.c.l.b16 %v37
  %v102 = vunpack.c.l.b16 %v38
  %v103 = vunpack.c.l.b16 %v39
  %v104 = vunpack.c.l.b16 %v40
  %v105 = vunpack.c.l.b16 %v41
  %v106 = vunpack.c.l.b16 %v42
  %v107 = vunpack.c.l.b16 %v43
  %v108 = vunpack.c.l.b16 %v44
  %v109 = vunpack.c.l.b16 %v45
  %v110 = vunpack.c.l.b16 %v46
  %v111 = vunpack.c.l.b16 %v47
  %v112 = vunpack.c.l.b16 %v48
  %v113 = vunpack.c.l.b16 %v49
  %v114 = vunpack.c.l.b16 %v50
  %v115 = vunpack.c.l.b16 %v51
  %v116 = vunpack.c.l.b16 %v52
  %v117 = vunpack.c.l.b16 %v53
  %v118 = vpack.c.b16 %v87, %v86
  %v119 = vpack.c.b16 %v89, %v88
  %v120 = vpack.c.b16 %v91, %v90
  %v121 = vpack.c.b16 %v93, %v92
  %v122 = vpack.c.b16 %v95, %v94
  %v123 = vpack.c.b16 %v97, %v96
  %v124 = vpack.c.b16 %v99, %v98
  %v125 = vpack.c.b16 %v101, %v100
  %v126 = vpack.c.b16 %v103, %v102
  %v127 = vpack.c.b16 %v105, %v104
  %v128 = vpack.c.b16 %v107, %v106
  %v129 = vpack.c.b16 %v109, %v108
  %v130 = vpack.c.b16 %v111, %v110
  %v131 = vpack.c.b16 %v113, %v112
  %v132 = vpack.c.b16 %v115, %v114
  %v133 = vpack.c.b16 %v117, %v116
  %vm134 = vcmask 64512
  %v136 = vsel %vm134, %v118, 0
  %v139 = vsel %vm134, %v119, 0
  %v142 = vsel %vm134, %v120, 0
  %v145 = vsel %vm134, %v121, 0
  %v148 = vsel %vm134, %v122, 0
  %v151 = vsel %vm134, %v123, 0
  %v154 = vsel %vm134, %v124, 0
  %v157 = vsel %vm134, %v125, 0
  %v160 = vsel %vm134, %v126, 0
  %v163 = vsel %vm134, %v127, 0
  %v166 = vsel %vm134, %v128, 0
  %v169 = vsel %vm134, %v129, 0
  %v172 = vsel %vm134, %v130, 0
  %v175 = vsel %vm134, %v131, 0
  %v178 = vsel %vm134, %v132, 0
  %v181 = vsel %vm134, %v133, 0
  %vm183 = vcmask 1043456
  %v185 = vsel %vm183, %v21, 0
  %187 = vmatpush.bf16.msra.mxu0 0
  %188 = vmatpush.bf16.msra.mxu0 0
  %189 = vmatpush.bf16.msra.mxu0 0
  %190 = vmatpush.bf16.msra.mxu0 0
  %191 = vmatpush.bf16.msra.mxu0 0
  %192 = vmatpush.bf16.msra.mxu0 0
  %193 = vmatpush.bf16.msra.mxu0 0
  %194 = vmatpush.bf16.msra.mxu0 %v185
  %195 = vmatmul.bf16.gmra.mxu0 %v136
  %v196 = vpop.f32.mrf.mxu0
  %v197 = vadd.f32 0.0, %v196
  %v198 = vpop.f32.mrf.mxu0
  %v199 = vadd.f32 0.0, %v198
  %200 = vmatmul.bf16.gmra.mxu0 %v139
  %v201 = vpop.f32.mrf.mxu0
  %v202 = vadd.f32 0.0, %v201
  %v203 = vpop.f32.mrf.mxu0
  %v204 = vadd.f32 0.0, %v203
  %205 = vmatmul.bf16.gmra.mxu0 %v142
  %v206 = vpop.f32.mrf.mxu0
  %v207 = vadd.f32 0.0, %v206
  %v208 = vpop.f32.mrf.mxu0
  %v209 = vadd.f32 0.0, %v208
  %210 = vmatmul.bf16.gmra.mxu0 %v145
  %v211 = vpop.f32.mrf.mxu0
  %v212 = vadd.f32 0.0, %v211
  %v213 = vpop.f32.mrf.mxu0
  %v214 = vadd.f32 0.0, %v213
  %215 = vmatmul.bf16.gmra.mxu0 %v148
  %v216 = vpop.f32.mrf.mxu0
  %v217 = vadd.f32 0.0, %v216
  %v218 = vpop.f32.mrf.mxu0
  %v219 = vadd.f32 0.0, %v218
  %220 = vmatmul.bf16.gmra.mxu0 %v151
  %v221 = vpop.f32.mrf.mxu0
  %v222 = vadd.f32 0.0, %v221
  %v223 = vpop.f32.mrf.mxu0
  %v224 = vadd.f32 0.0, %v223
  %225 = vmatmul.bf16.gmra.mxu0 %v154
  %v226 = vpop.f32.mrf.mxu0
  %v227 = vadd.f32 0.0, %v226
  %v228 = vpop.f32.mrf.mxu0
  %v229 = vadd.f32 0.0, %v228
  %230 = vmatmul.bf16.gmra.mxu0 %v157
  %v231 = vpop.f32.mrf.mxu0
  %v232 = vadd.f32 0.0, %v231
  %v233 = vpop.f32.mrf.mxu0
  %v234 = vadd.f32 0.0, %v233
  %235 = vmatmul.bf16.gmra.mxu0 %v160
  %v236 = vpop.f32.mrf.mxu0
  %v237 = vadd.f32 0.0, %v236
  %v238 = vpop.f32.mrf.mxu0
  %v239 = vadd.f32 0.0, %v238
  %240 = vmatmul.bf16.gmra.mxu0 %v163
  %v241 = vpop.f32.mrf.mxu0
  %v242 = vadd.f32 0.0, %v241
  %v243 = vpop.f32.mrf.mxu0
  %v244 = vadd.f32 0.0, %v243
  %245 = vmatmul.bf16.gmra.mxu0 %v166
  %v246 = vpop.f32.mrf.mxu0
  %v247 = vadd.f32 0.0, %v246
  %v248 = vpop.f32.mrf.mxu0
  %v249 = vadd.f32 0.0, %v248
  %250 = vmatmul.bf16.gmra.mxu0 %v169
  %v251 = vpop.f32.mrf.mxu0
  %v252 = vadd.f32 0.0, %v251
  %v253 = vpop.f32.mrf.mxu0
  %v254 = vadd.f32 0.0, %v253
  %255 = vmatmul.bf16.gmra.mxu0 %v172
  %v256 = vpop.f32.mrf.mxu0
  %v257 = vadd.f32 0.0, %v256
  %v258 = vpop.f32.mrf.mxu0
  %v259 = vadd.f32 0.0, %v258
  %260 = vmatmul.bf16.gmra.mxu0 %v175
  %v261 = vpop.f32.mrf.mxu0
  %v262 = vadd.f32 0.0, %v261
  %v263 = vpop.f32.mrf.mxu0
  %v264 = vadd.f32 0.0, %v263
  %265 = vmatmul.bf16.gmra.mxu0 %v178
  %v266 = vpop.f32.mrf.mxu0
  %v267 = vadd.f32 0.0, %v266
  %v268 = vpop.f32.mrf.mxu0
  %v269 = vadd.f32 0.0, %v268
  %270 = vmatmul.bf16.gmra.mxu0 %v181
  %v271 = vpop.f32.mrf.mxu0
  %v272 = vadd.f32 0.0, %v271
  %v273 = vpop.f32.mrf.mxu0
  %v274 = vadd.f32 0.0, %v273
  %275 = vdwg.mxu0
  %v276 = vmul.f32 %v197, 0.17677669
  %v277 = vmul.f32 %v199, 0.17677669
  %v278 = vmul.f32 %v202, 0.17677669
  %v279 = vmul.f32 %v204, 0.17677669
  %v280 = vmul.f32 %v207, 0.17677669
  %v281 = vmul.f32 %v209, 0.17677669
  %v282 = vmul.f32 %v212, 0.17677669
  %v283 = vmul.f32 %v214, 0.17677669
  %v284 = vmul.f32 %v217, 0.17677669
  %v285 = vmul.f32 %v219, 0.17677669
  %v286 = vmul.f32 %v222, 0.17677669
  %v287 = vmul.f32 %v224, 0.17677669
  %v288 = vmul.f32 %v227, 0.17677669
  %v289 = vmul.f32 %v229, 0.17677669
  %v290 = vmul.f32 %v232, 0.17677669
  %v291 = vmul.f32 %v234, 0.17677669
  %v292 = vmul.f32 %v237, 0.17677669
  %v293 = vmul.f32 %v239, 0.17677669
  %v294 = vmul.f32 %v242, 0.17677669
  %v295 = vmul.f32 %v244, 0.17677669
  %v296 = vmul.f32 %v247, 0.17677669
  %v297 = vmul.f32 %v249, 0.17677669
  %v298 = vmul.f32 %v252, 0.17677669
  %v299 = vmul.f32 %v254, 0.17677669
  %v300 = vmul.f32 %v257, 0.17677669
  %v301 = vmul.f32 %v259, 0.17677669
  %v302 = vmul.f32 %v262, 0.17677669
  %v303 = vmul.f32 %v264, 0.17677669
  %v304 = vmul.f32 %v267, 0.17677669
  %v305 = vmul.f32 %v269, 0.17677669
  %v306 = vmul.f32 %v272, 0.17677669
  %v307 = vmul.f32 %v274, 0.17677669
  %v308 = vpack.c.bf16 %v277, %v276
  %v309 = vpack.c.bf16 %v279, %v278
  %v310 = vpack.c.bf16 %v281, %v280
  %v311 = vpack.c.bf16 %v283, %v282
  %v312 = vpack.c.bf16 %v285, %v284
  %v313 = vpack.c.bf16 %v287, %v286
  %v314 = vpack.c.bf16 %v289, %v288
  %v315 = vpack.c.bf16 %v291, %v290
  %v316 = vpack.c.bf16 %v293, %v292
  %v317 = vpack.c.bf16 %v295, %v294
  %v318 = vpack.c.bf16 %v297, %v296
  %v319 = vpack.c.bf16 %v299, %v298
  %v320 = vpack.c.bf16 %v301, %v300
  %v321 = vpack.c.bf16 %v303, %v302
  %v322 = vpack.c.bf16 %v305, %v304
  %v323 = vpack.c.bf16 %v307, %v306
  %v324 = vld [vmem:[%s2] sm:$0xff]
  %v325 = vld [vmem:[%s3] sm:$0xff]
  %327 = vset.pattern.permute.xlu0 0
  %328 = vperm.xlu0 %327, %v325
  %v329 = vpop.permute.xlu0 %328
  %v332 = vunpack.c.l.b16 %v324
  %v333 = vunpack.c.h.b16 %v324
  %v334 = vpack.c.b16 %v332, %v332
  %v335 = vpack.c.b16 %v333, %v333
  %338 = vmatpush.bf16.msra.mxu0 %v315
  %339 = vmatpush.bf16.msra.mxu0 %v314
  %340 = vmatpush.bf16.msra.mxu0 %v313
  %341 = vmatpush.bf16.msra.mxu0 %v312
  %342 = vmatpush.bf16.msra.mxu0 %v311
  %343 = vmatpush.bf16.msra.mxu0 %v310
  %344 = vmatpush.bf16.msra.mxu0 %v309
  %345 = vmatpush.bf16.msra.mxu0 %v308
  %346 = vmatmul.bf16.gmra.mxu0 %v334
  %v347 = vpop.f32.mrf.mxu0
  %v348 = vadd.f32 %v329, %v347
  %v349 = vpop.f32.mrf.mxu0
  %350 = vdwg.mxu0
  %351 = vmatpush.bf16.msra.mxu0 %v323
  %352 = vmatpush.bf16.msra.mxu0 %v322
  %353 = vmatpush.bf16.msra.mxu0 %v321
  %354 = vmatpush.bf16.msra.mxu0 %v320
  %355 = vmatpush.bf16.msra.mxu0 %v319
  %356 = vmatpush.bf16.msra.mxu0 %v318
  %357 = vmatpush.bf16.msra.mxu0 %v317
  %358 = vmatpush.bf16.msra.mxu0 %v316
  %359 = vmatmul.bf16.gmra.mxu0 %v335
  %v360 = vpop.f32.mrf.mxu0
  %v361 = vadd.f32 %v348, %v360
  %v362 = vpop.f32.mrf.mxu0
  %363 = vdwg.mxu0
  %v364 = vmul.f32 %v361, %v361
  %vm365 = vcmask 31744
  %v366 = vsel %vm365, %v364, 0.0
  %v367 = vrot.slane %v366, 4
  %v368 = vadd.f32 %v366, %v367
  %v369 = vrot.slane %v368, 2
  %v370 = vadd.f32 %v368, %v369
  %v371 = vrot.slane %v370, 1
  %v372 = vadd.f32 %v370, %v371
  %v373 = vmax.f32 %v372, 1e-24
  %v374 = vrsqrt.pop %v373
  %v375 = vmul.f32 %v374, %v373
  %v376 = vmul.f32 %v375, %v374
  %v377 = vmul.f32 0.5, %v376
  %v378 = vsub.f32 1.5, %v377
  %v379 = vmul.f32 %v374, %v378
  %vm380 = vweird.f32 %v373
  %vm381 = vweird.f32 %v374
  %vm382 = vmor %vm380, %vm381
  %v383 = vsel %vm382, %v374, %v379
  %v384 = vmul.f32 %v361, %v383
  %v385 = vld [vmem:[%s4] sm:$0xff]
  %v386 = vmul.f32 %v385, 2.828427
  %388 = vset.pattern.permute.xlu0 0
  %389 = vperm.xlu0 %388, %v386
  %v390 = vpop.permute.xlu0 %389
  %v392 = vmul.f32 %v384, %v390
  %393 = vst.msk [vmem:[%s5] sm:$0xff] %vm365, %v392
  // Predicated region
  $region22: #{tpu_custom_call.1} parent=0 // pred_check
    _
  $region23: #{tpu_custom_call.1} parent=0 // pred_check_branch
    %395 = sbr.rel (0) target = $region25
  $region24: #{tpu_custom_call.1} parent=0 // pred_region
    _
  $region25: #{tpu_custom_call.1} parent=0 // pred_fallthru
    _
  // Predicated region
  $region26: #{tpu_custom_call.1} parent=0 // pred_check
    _
  $region27: #{tpu_custom_call.1} parent=0 // pred_check_branch
    %397 = sbr.rel (0) target = $region29
  $region28: #{tpu_custom_call.1} parent=0 // pred_region
    _
  $region29: #{tpu_custom_call.1} parent=0 // pred_fallthru
    _

</llo_original>
